<compile_context>
chip_gen: v5e
topology: v5e:2x2
jax: 0.10.0
libtpu: 0.0.40
codegen_flags: <defaults>
</compile_context>

<pallas_src>
import functools

import jax
import jax.numpy as jnp
from jax.experimental import pallas as pl
from jax.experimental.pallas import tpu as pltpu


def _round_up(x, m):
    return (x + m - 1) // m * m


def _conv_gemm_stats_kernel(p_ref, w_ref, y_ref, psum_ref, pssq_ref, acc_ref):
    """Tiled GEMM (conv as im2col) + per-M-tile per-channel sum / sum-of-squares.

    p_ref:    (tm, tk)    bf16 im2col patch tile
    w_ref:    (tk, tn)    bf16 weight tile
    y_ref:    (tm, tn)    f32 conv output tile
    psum_ref: (1, 1, tn)  f32 per-channel sum over this tile's tm rows
    pssq_ref: (1, 1, tn)  f32 per-channel sum of squares over this tile's tm rows
    acc_ref:  (tm, tn)    f32 accumulator scratch
    """
    k = pl.program_id(2)

    @pl.when(k == 0)
    def _():
        acc_ref[...] = jnp.zeros_like(acc_ref)

    acc_ref[...] += jnp.dot(p_ref[...], w_ref[...],
                            preferred_element_type=jnp.float32)

    @pl.when(k == pl.num_programs(2) - 1)
    def _():
        acc = acc_ref[...]
        y_ref[...] = acc
        psum_ref[...] = jnp.sum(acc, axis=0, keepdims=True)[None]
        pssq_ref[...] = jnp.sum(acc * acc, axis=0, keepdims=True)[None]


def _bn_lrelu_kernel(y_ref, scale_ref, bias_ref, o_ref, *, neg_slope):
    """Elementwise BatchNorm affine (precomputed per-channel scale/bias) + LeakyReLU."""
    z = y_ref[...] * scale_ref[...] + bias_ref[...]
    # LeakyReLU with 0 < slope < 1: max(z, slope*z) == where(z>=0, z, slope*z).
    o_ref[...] = jnp.maximum(z, neg_slope * z).astype(o_ref.dtype)


def discriminator_cnn_block(x_nchw, weight, gamma, beta, *, stride=2, padding=1,
                            eps=1e-5, neg_slope=0.2):
    """Forward pass of DiscriminatorCNNBlock (use_dropout=False).

    x_nchw: (N, Cin, H, W)      weight: (Cout, Cin, kH, kW)   (PyTorch conventions)
    gamma, beta: (Cout,)        returns: (N, Cout, Ho, Wo) float32
    """
    N, Cin, H, W = x_nchw.shape
    Cout, Cin_w, kH, kW = weight.shape
    assert Cin == Cin_w
    Ho = (H + 2 * padding - kH) // stride + 1
    Wo = (W + 2 * padding - kW) // stride + 1

    M = N * Ho * Wo              # GEMM rows (true count, used for BN statistics)
    K = kH * kW * Cin            # GEMM contraction

    # ---- tile sizes: lane-dense Cout, MXU-width K tiles, VMEM-friendly M tiles ----
    tn = min(512, _round_up(Cout, 128))   # wide lane-dense output tiles
    tk = min(512, _round_up(K, 128))
    tm = min(512, _round_up(M, 16))
    Coutp = _round_up(Cout, tn)
    Kp = _round_up(K, tk)
    Mp = _round_up(M, tm)
    gm, gn, gk = Mp // tm, Coutp // tn, Kp // tk

    # ---- glue: NCHW -> NHWC, cast to bf16 FIRST, pad, im2col (kh-major, kw, Cin) ----
    x = jnp.transpose(x_nchw, (0, 2, 3, 1)).astype(jnp.bfloat16)
    x = jnp.pad(x, ((0, 0), (padding, padding), (padding, padding), (0, 0)))
    patches = jnp.stack(
        [x[:, kh:kh + stride * Ho:stride, kw:kw + stride * Wo:stride, :]
         for kh in range(kH) for kw in range(kW)],
        axis=3,
    ).reshape(M, K)
    patches = jnp.pad(patches, ((0, Mp - M), (0, Kp - K)))          # zero pad: exact

    # weight (Cout, Cin, kH, kW) -> (kH, kW, Cin, Cout) -> (K, Cout): same K ordering.
    w = jnp.transpose(weight, (2, 3, 1, 0)).reshape(K, Cout).astype(jnp.bfloat16)
    w = jnp.pad(w, ((0, Kp - K), (0, Coutp - Cout)))

    vmem_limit = 32 * 1024 * 1024

    # ---- pass 1: tiled conv GEMM + per-tile per-channel sum / sumsq ----
    y_conv, psum, pssq = pl.pallas_call(
        _conv_gemm_stats_kernel,
        out_shape=(jax.ShapeDtypeStruct((Mp, Coutp), jnp.float32),
                   jax.ShapeDtypeStruct((gm, 1, Coutp), jnp.float32),
                   jax.ShapeDtypeStruct((gm, 1, Coutp), jnp.float32)),
        grid_spec=pltpu.PrefetchScalarGridSpec(
            num_scalar_prefetch=0,
            grid=(gm, gn, gk),
            in_specs=[pl.BlockSpec((tm, tk), lambda i, j, k: (i, k)),
                      pl.BlockSpec((tk, tn), lambda i, j, k: (k, j))],
            out_specs=[pl.BlockSpec((tm, tn), lambda i, j, k: (i, j)),
                       pl.BlockSpec((1, 1, tn), lambda i, j, k: (i, 0, j)),
                       pl.BlockSpec((1, 1, tn), lambda i, j, k: (i, 0, j))],
            scratch_shapes=[pltpu.VMEM((tm, tn), jnp.float32)]),
        compiler_params=pltpu.CompilerParams(
            dimension_semantics=("parallel", "parallel", "arbitrary"),
            vmem_limit_bytes=vmem_limit),
    )(patches, w)

    # ---- tiny plain-JAX reduction: global batch statistics -> per-channel scale/bias ----
    gamma_p = jnp.pad(gamma.astype(jnp.float32), (0, Coutp - Cout))
    beta_p = jnp.pad(beta.astype(jnp.float32), (0, Coutp - Cout))
    ch_sum = jnp.sum(psum[:, 0, :], axis=0)            # (Coutp,)
    ch_ssq = jnp.sum(pssq[:, 0, :], axis=0)            # (Coutp,)
    mean = ch_sum / M                                  # divide by TRUE count (zero-padded
    var = jnp.maximum(ch_ssq / M - mean * mean, 0.0)   # rows contribute exactly zero)
    inv_std = jax.lax.rsqrt(var + eps)
    scale = (gamma_p * inv_std).reshape(1, Coutp)
    bias = (beta_p - mean * gamma_p * inv_std).reshape(1, Coutp)

    # ---- pass 2: tiled elementwise BatchNorm affine + LeakyReLU ----
    out_p = pl.pallas_call(
        functools.partial(_bn_lrelu_kernel, neg_slope=neg_slope),
        out_shape=jax.ShapeDtypeStruct((Mp, Coutp), jnp.float32),
        grid_spec=pltpu.PrefetchScalarGridSpec(
            num_scalar_prefetch=0,
            grid=(gm, gn),
            in_specs=[pl.BlockSpec((tm, tn), lambda i, j: (i, j)),
                      pl.BlockSpec((1, tn), lambda i, j: (0, j)),
                      pl.BlockSpec((1, tn), lambda i, j: (0, j))],
            out_specs=pl.BlockSpec((tm, tn), lambda i, j: (i, j))),
        compiler_params=pltpu.CompilerParams(
            dimension_semantics=("parallel", "parallel"),
            vmem_limit_bytes=vmem_limit),
    )(y_conv, scale, bias)

    out = out_p[:M, :Cout].reshape(N, Ho, Wo, Cout)
    return jnp.transpose(out, (0, 3, 1, 2))            # back to NCHW at the API boundary


def _reference(x_nchw, weight, gamma, beta, eps=1e-5, neg_slope=0.2):
    """Pure-JAX f32 reference of the same forward pass."""
    y = jax.lax.conv_general_dilated(
        x_nchw.astype(jnp.float32), weight.astype(jnp.float32),
        window_strides=(2, 2), padding=((1, 1), (1, 1)),
        dimension_numbers=("NCHW", "OIHW", "NCHW"),
        precision=jax.lax.Precision.HIGHEST)
    mean = jnp.mean(y, axis=(0, 2, 3), keepdims=True)
    var = jnp.mean((y - mean) ** 2, axis=(0, 2, 3), keepdims=True)
    y = (y - mean) / jnp.sqrt(var + eps)
    y = y * gamma.reshape(1, -1, 1, 1) + beta.reshape(1, -1, 1, 1)
    return jnp.where(y >= 0, y, neg_slope * y)


if __name__ == "__main__":
    key = jax.random.PRNGKey(0)
    kx, kw = jax.random.split(key)

    N, Cin, Cout, H, W = 2, 4, 8, 16, 16
    kH = kW = 4

    x = jax.random.normal(kx, (N, Cin, H, W), dtype=jnp.float32)
    # Conv2d weight (bias=False); deterministic synthetic init.
    weight = jax.random.normal(kw, (Cout, Cin, kH, kW), dtype=jnp.float32) * 0.05
    # BatchNorm2d default affine init: weight=1, bias=0.
    gamma = jnp.ones((Cout,), dtype=jnp.float32)
    beta = jnp.zeros((Cout,), dtype=jnp.float32)

    out = jax.block_until_ready(discriminator_cnn_block(x, weight, gamma, beta))
    assert out.shape == (N, Cout, H // 2, W // 2), out.shape

    # Tight check against a reference whose conv operands are rounded to bf16 exactly
    # like the kernel's (everything else f32) — isolates kernel correctness.
    x_q = x.astype(jnp.bfloat16).astype(jnp.float32)
    w_q = weight.astype(jnp.bfloat16).astype(jnp.float32)
    ref_q = jax.block_until_ready(_reference(x_q, w_q, gamma, beta))
    err_q = float(jnp.max(jnp.abs(out - ref_q)))
    assert jnp.allclose(out, ref_q, atol=2e-3, rtol=2e-3), err_q

    # Loose check against the pure-f32 module semantics (bf16 matmul operands).
    ref = jax.block_until_ready(_reference(x, weight, gamma, beta))
    err = float(jnp.max(jnp.abs(out - ref)))
    assert jnp.allclose(out, ref, atol=5e-2, rtol=5e-2), err

    print("KERNEL_OK")
</pallas_src>

<mosaic_0001>
module attributes {stable_mosaic.version = 11 : i64} {
  func.func @_conv_gemm_stats_kernel(%arg0: i32, %arg1: i32, %arg2: i32, %arg3: memref<128x128xbf16, #tpu.memory_space<vmem>>, %arg4: memref<128x128xbf16, #tpu.memory_space<vmem>>, %arg5: memref<128x128xf32, #tpu.memory_space<vmem>>, %arg6: memref<1x1x128xf32, #tpu.memory_space<vmem>>, %arg7: memref<1x1x128xf32, #tpu.memory_space<vmem>>, %arg8: memref<128x128xf32, #tpu.memory_space<vmem>>) attributes {dimension_semantics = [#tpu.dimension_semantics<parallel>, #tpu.dimension_semantics<parallel>, #tpu.dimension_semantics<arbitrary>], iteration_bounds = array<i64: 1, 1, 1>, scalar_prefetch = 0 : i64, scratch_operands = 1 : i64, tpu.core_type = #tpu.core_type<tc>, window_params = [{transform_indices = @transform_0, window_bounds = array<i64: 128, 128>}, {transform_indices = @transform_1, window_bounds = array<i64: 128, 128>}, {transform_indices = @transform_2, window_bounds = array<i64: 128, 128>}, {transform_indices = @transform_3, window_bounds = array<i64: 1, 1, 128>}, {transform_indices = @transform_4, window_bounds = array<i64: 1, 1, 128>}]} {
    %c0_i32 = arith.constant 0 : i32
    %0 = arith.cmpi eq, %arg2, %c0_i32 : i32
    %1 = arith.extui %0 : i1 to i32
    %c0_i32_0 = arith.constant 0 : i32
    %2 = arith.cmpi ne, %1, %c0_i32_0 : i32
    scf.if %2 {
      %cst_10 = arith.constant 0.000000e+00 : f32
      %12 = vector.broadcast %cst_10 : f32 to vector<128x128xf32>
      %c0_11 = arith.constant 0 : index
      %c0_12 = arith.constant 0 : index
      %13 = vector.load %arg8[%c0_11, %c0_12] : memref<128x128xf32, #tpu.memory_space<vmem>>, vector<128x128xf32>
      tpu.vector_store %arg8[%c0_11, %c0_12], %12 {strides = array<i32>} : memref<128x128xf32, #tpu.memory_space<vmem>>, vector<128x128xf32>,
    } else {
    }
    %c0 = arith.constant 0 : index
    %c0_1 = arith.constant 0 : index
    %3 = vector.load %arg8[%c0, %c0_1] : memref<128x128xf32, #tpu.memory_space<vmem>>, vector<128x128xf32>
    %c0_2 = arith.constant 0 : index
    %c0_3 = arith.constant 0 : index
    %4 = vector.load %arg3[%c0_2, %c0_3] : memref<128x128xbf16, #tpu.memory_space<vmem>>, vector<128x128xbf16>
    %c0_4 = arith.constant 0 : index
    %c0_5 = arith.constant 0 : index
    %5 = vector.load %arg4[%c0_4, %c0_5] : memref<128x128xbf16, #tpu.memory_space<vmem>>, vector<128x128xbf16>
    %cst = arith.constant dense<0.000000e+00> : vector<128x128xf32>
    %6 = tpu.matmul %4, %5, %cst {dimension_numbers = #tpu.dot_dimension_numbers<[1], [0], [0], [1], [0, 0, 1, 1], [], []>} : vector<128x128xbf16>, vector<128x128xbf16>, vector<128x128xf32> -> vector<128x128xf32>
    %7 = arith.addf %3, %6 : vector<128x128xf32>
    %c0_6 = arith.constant 0 : index
    %c0_7 = arith.constant 0 : index
    %8 = vector.load %arg8[%c0_6, %c0_7] : memref<128x128xf32, #tpu.memory_space<vmem>>, vector<128x128xf32>
    tpu.vector_store %arg8[%c0_6, %c0_7], %7 {strides = array<i32>} : memref<128x128xf32, #tpu.memory_space<vmem>>, vector<128x128xf32>,
    %c0_i32_8 = arith.constant 0 : i32
    %9 = arith.cmpi eq, %arg2, %c0_i32_8 : i32
    %10 = arith.extui %9 : i1 to i32
    %c0_i32_9 = arith.constant 0 : i32
    %11 = arith.cmpi ne, %10, %c0_i32_9 : i32
    scf.if %11 {
      %c0_10 = arith.constant 0 : index
      %c0_11 = arith.constant 0 : index
      %12 = vector.load %arg8[%c0_10, %c0_11] : memref<128x128xf32, #tpu.memory_space<vmem>>, vector<128x128xf32>
      %c0_12 = arith.constant 0 : index
      %c0_13 = arith.constant 0 : index
      %13 = vector.load %arg5[%c0_12, %c0_13] : memref<128x128xf32, #tpu.memory_space<vmem>>, vector<128x128xf32>
      tpu.vector_store %arg5[%c0_12, %c0_13], %12 {strides = array<i32>} : memref<128x128xf32, #tpu.memory_space<vmem>>, vector<128x128xf32>,
      %cst_14 = arith.constant dense<0.000000e+00> : vector<128xf32>
      %14 = vector.multi_reduction <add>, %12, %cst_14 [0] : vector<128x128xf32> to vector<128xf32>
      %15 = vector.shape_cast %14 : vector<128xf32> to vector<1x128xf32>
      %16 = vector.shape_cast %15 : vector<1x128xf32> to vector<1x1x128xf32>
      %c0_15 = arith.constant 0 : index
      %c0_16 = arith.constant 0 : index
      %c0_17 = arith.constant 0 : index
      %17 = vector.load %arg6[%c0_15, %c0_16, %c0_17] : memref<1x1x128xf32, #tpu.memory_space<vmem>>, vector<1x1x128xf32>
      tpu.vector_store %arg6[%c0_15, %c0_16, %c0_17], %16 {strides = array<i32>} : memref<1x1x128xf32, #tpu.memory_space<vmem>>, vector<1x1x128xf32>,
      %18 = arith.mulf %12, %12 : vector<128x128xf32>
      %cst_18 = arith.constant dense<0.000000e+00> : vector<128xf32>
      %19 = vector.multi_reduction <add>, %18, %cst_18 [0] : vector<128x128xf32> to vector<128xf32>
      %20 = vector.shape_cast %19 : vector<128xf32> to vector<1x128xf32>
      %21 = vector.shape_cast %20 : vector<1x128xf32> to vector<1x1x128xf32>
      %c0_19 = arith.constant 0 : index
      %c0_20 = arith.constant 0 : index
      %c0_21 = arith.constant 0 : index
      %22 = vector.load %arg7[%c0_19, %c0_20, %c0_21] : memref<1x1x128xf32, #tpu.memory_space<vmem>>, vector<1x1x128xf32>
      tpu.vector_store %arg7[%c0_19, %c0_20, %c0_21], %21 {strides = array<i32>} : memref<1x1x128xf32, #tpu.memory_space<vmem>>, vector<1x1x128xf32>,
    } else {
    }
    return
  }
  func.func @transform_0(%arg0: i32, %arg1: i32, %arg2: i32) -> (i32, i32) {
    %c0_i32 = arith.constant 0 : i32
    return %arg0, %arg2 : i32, i32
  }
  func.func @transform_1(%arg0: i32, %arg1: i32, %arg2: i32) -> (i32, i32) {
    %c0_i32 = arith.constant 0 : i32
    return %arg2, %arg1 : i32, i32
  }
  func.func @transform_2(%arg0: i32, %arg1: i32, %arg2: i32) -> (i32, i32) {
    %c0_i32 = arith.constant 0 : i32
    return %arg0, %arg1 : i32, i32
  }
  func.func @transform_3(%arg0: i32, %arg1: i32, %arg2: i32) -> (i32, i32, i32) {
    %c0_i32 = arith.constant 0 : i32
    %c0_i32_0 = arith.constant 0 : i32
    return %arg0, %c0_i32, %arg1 : i32, i32, i32
  }
  func.func @transform_4(%arg0: i32, %arg1: i32, %arg2: i32) -> (i32, i32, i32) {
    %c0_i32 = arith.constant 0 : i32
    %c0_i32_0 = arith.constant 0 : i32
    return %arg0, %c0_i32, %arg1 : i32, i32, i32
  }
}

</mosaic_0001>

<llo_original>
// kernel: tpu_custom_call.1
$region0: #{tpu_custom_call.1}
  #allocation0 [shape = 'u32[]', space=smem, size = 0x4, offset = 0x4, fixed_abs, tag = 'smem constant byte address 0x4 - core index']
  #allocation1 [shape = 'u32[72,128]{1,0:T(1,128)}', space=vmem, size = 0x9000, scoped, tag = 'internal scratch']
  #allocation2 [shape = 'f32[128,128]{1,0:T(8,128)}', space=vmem, size = 0x10000, scoped, tag = 'scratch operand']
  %s0 = inlined_call_operand.hbm [shape: bf16[128,128], index: 0, kind: input, shape index: {}]
  %s1 = inlined_call_operand.hbm [shape: bf16[128,128], index: 1, kind: input, shape index: {}]
  %s2 = inlined_call_operand.hbm [shape: f32[128,128], index: 2, kind: output, shape index: {0}]
  %s3 = inlined_call_operand.hbm [shape: f32[1,1,128], index: 3, kind: output, shape index: {1}]
  %s4 = inlined_call_operand.hbm [shape: f32[1,1,128], index: 4, kind: output, shape index: {2}]
  %5 = xla_tuple %s2, %s3, %s4
  %s6 = sld [smem:[#allocation0]]
  $region50: #{tpu_custom_call.1} parent=0
    _
  %s8 = ssub.s32 1, %s6
  %s9 = scalar_select 0, %s8, %s6
  $region1: #{tpu_custom_call.1} parent=0
    #allocation3 [shape = 'u8[32768]{0}', space=vmem, size = 0x8000, scoped, tag = 'input window, operand 0, single buffered']
    #allocation4 [shape = 's32[1]{0}', space=sflag, size = 0x4, scoped, tag = 'scoped memory for tpu_custom_call.1']
    #allocation5 [shape = 's32[1]{0}', space=sflag, size = 0x4, scoped, tag = 'scoped memory for tpu_custom_call.1']
    #allocation6 [shape = 'u8[32768]{0}', space=vmem, size = 0x8000, scoped, tag = 'input window, operand 1, single buffered']
    #allocation7 [shape = 's32[1]{0}', space=sflag, size = 0x4, scoped, tag = 'scoped memory for tpu_custom_call.1']
    #allocation8 [shape = 'u8[65536]{0}', space=vmem, size = 0x10000, scoped, tag = 'output window, operand 0, single buffered']
    #allocation9 [shape = 'u8[512]{0}', space=vmem, size = 0x400, scoped, tag = 'output window, operand 1, single buffered']
    #allocation10 [shape = 's32[1]{0}', space=sflag, size = 0x4, scoped, tag = 'scoped memory for tpu_custom_call.1']
    #allocation11 [shape = 'u8[512]{0}', space=vmem, size = 0x400, scoped, tag = 'output window, operand 2, single buffered']
    %10 = vsyncpa [#allocation4], 0
    %11 = vsyncpa [#allocation7], 0
    %12 = vsyncpa [#allocation5], 0
    %13 = vsyncpa [#allocation10], 0
    // Predicated region
    $region2: #{tpu_custom_call.1} parent=1 // pred_check
      _
    $region3: #{tpu_custom_call.1} parent=1 // pred_check_branch
      %15 = sbr.rel (0) target = $region5
    $region4: #{tpu_custom_call.1} parent=1 // pred_region
      %17 = vsyncadd [#allocation4], 0
      %s18 = sshll.u32 %s0, 4
      %s19 = int_to_ptr.hbm [resolvable:$true] %s18
      %s20 = sshll.u32 [#allocation3], 4
      %s21 = int_to_ptr.vmem [resolvable:$true] %s20
      %26 = dma.hbm_to_vmem [thread:$0]  %s19, 1024, %s21, [#allocation4], 64, 64, 4
    $region5: #{tpu_custom_call.1} parent=1 // pred_fallthru
      _
    // Predicated region
    $region6: #{tpu_custom_call.1} parent=1 // pred_check
      _
    $region7: #{tpu_custom_call.1} parent=1 // pred_check_branch
      %28 = sbr.rel (0) target = $region9
    $region8: #{tpu_custom_call.1} parent=1 // pred_region
      %30 = vsyncadd [#allocation7], 0
      %s31 = sshll.u32 %s1, 4
      %s32 = int_to_ptr.hbm [resolvable:$true] %s31
      %s33 = sshll.u32 [#allocation6], 4
      %s34 = int_to_ptr.vmem [resolvable:$true] %s33
      %39 = dma.hbm_to_vmem [thread:$0]  %s32, 1024, %s34, [#allocation7], 64, 64, 4
    $region9: #{tpu_custom_call.1} parent=1 // pred_fallthru
      _
    // Predicated region
    $region10: #{tpu_custom_call.1} parent=1 // pred_check
      _
    $region11: #{tpu_custom_call.1} parent=1 // pred_check_branch
      %41 = sbr.rel (0) target = $region13
    $region12: #{tpu_custom_call.1} parent=1 // pred_region
      %43 = dma.done [#allocation4], 1024
    $region13: #{tpu_custom_call.1} parent=1 // pred_fallthru
      _
    // Predicated region
    $region14: #{tpu_custom_call.1} parent=1 // pred_check
      _
    $region15: #{tpu_custom_call.1} parent=1 // pred_check_branch
      %45 = sbr.rel (0) target = $region17
    $region16: #{tpu_custom_call.1} parent=1 // pred_region
      %47 = dma.done [#allocation7], 1024
    $region17: #{tpu_custom_call.1} parent=1 // pred_fallthru
      _
    %p48 = scmp.eq.s32.totalorder 0, 0
    // Predicated region
    $region18: #{tpu_custom_call.1} parent=1 // pred_check
      %p49 = pneg %p48
    $region19: #{tpu_custom_call.1} parent=1 // pred_check_branch
      %51 = sbr.rel (%p49) target = $region21
    $region20: #{tpu_custom_call.1} parent=1 // pred_region
      %52 = vst [vmem:[#allocation2] sm:$0xff] 0.0
      %53 = vst [vmem:[#allocation2 + $0x8] sm:$0xff] 0.0
      %54 = vst [vmem:[#allocation2 + $0x10] sm:$0xff] 0.0
      %55 = vst [vmem:[#allocation2 + $0x18] sm:$0xff] 0.0
      %56 = vst [vmem:[#allocation2 + $0x20] sm:$0xff] 0.0
      %57 = vst [vmem:[#allocation2 + $0x28] sm:$0xff] 0.0
      %58 = vst [vmem:[#allocation2 + $0x30] sm:$0xff] 0.0
      %59 = vst [vmem:[#allocation2 + $0x38] sm:$0xff] 0.0
      %60 = vst [vmem:[#allocation2 + $0x40] sm:$0xff] 0.0
      %61 = vst [vmem:[#allocation2 + $0x48] sm:$0xff] 0.0
      %62 = vst [vmem:[#allocation2 + $0x50] sm:$0xff] 0.0
      %63 = vst [vmem:[#allocation2 + $0x58] sm:$0xff] 0.0
      %64 = vst [vmem:[#allocation2 + $0x60] sm:$0xff] 0.0
      %65 = vst [vmem:[#allocation2 + $0x68] sm:$0xff] 0.0
      %66 = vst [vmem:[#allocation2 + $0x70] sm:$0xff] 0.0
      %67 = vst [vmem:[#allocation2 + $0x78] sm:$0xff] 0.0
    $region21: #{tpu_custom_call.1} parent=1 // pred_fallthru
      _
    %v68 = vld [vmem:[#allocation2] sm:$0xff]
    %v69 = vld [vmem:[#allocation2 + $0x8] sm:$0xff]
    %v70 = vld [vmem:[#allocation2 + $0x10] sm:$0xff]
    %v71 = vld [vmem:[#allocation2 + $0x18] sm:$0xff]
    %v72 = vld [vmem:[#allocation2 + $0x20] sm:$0xff]
    %v73 = vld [vmem:[#allocation2 + $0x28] sm:$0xff]
    %v74 = vld [vmem:[#allocation2 + $0x30] sm:$0xff]
    %v75 = vld [vmem:[#allocation2 + $0x38] sm:$0xff]
    %v76 = vld [vmem:[#allocation2 + $0x40] sm:$0xff]
    %v77 = vld [vmem:[#allocation2 + $0x48] sm:$0xff]
    %v78 = vld [vmem:[#allocation2 + $0x50] sm:$0xff]
    %v79 = vld [vmem:[#allocation2 + $0x58] sm:$0xff]
    %v80 = vld [vmem:[#allocation2 + $0x60] sm:$0xff]
    %v81 = vld [vmem:[#allocation2 + $0x68] sm:$0xff]
    %v82 = vld [vmem:[#allocation2 + $0x70] sm:$0xff]
    %v83 = vld [vmem:[#allocation2 + $0x78] sm:$0xff]
    %v84 = vld [vmem:[#allocation3] sm:$0xf]
    %v85 = vld [vmem:[#allocation3 + $0x4] sm:$0xf]
    %v86 = vld [vmem:[#allocation3 + $0x8] sm:$0xf]
    %v87 = vld [vmem:[#allocation3 + $0xc] sm:$0xf]
    %v88 = vld [vmem:[#allocation3 + $0x10] sm:$0xf]
    %v89 = vld [vmem:[#allocation3 + $0x14] sm:$0xf]
    %v90 = vld [vmem:[#allocation3 + $0x18] sm:$0xf]
    %v91 = vld [vmem:[#allocation3 + $0x1c] sm:$0xf]
    %v92 = vld [vmem:[#allocation3 + $0x20] sm:$0xf]
    %v93 = vld [vmem:[#allocation3 + $0x24] sm:$0xf]
    %v94 = vld [vmem:[#allocation3 + $0x28] sm:$0xf]
    %v95 = vld [vmem:[#allocation3 + $0x2c] sm:$0xf]
    %v96 = vld [vmem:[#allocation3 + $0x30] sm:$0xf]
    %v97 = vld [vmem:[#allocation3 + $0x34] sm:$0xf]
    %v98 = vld [vmem:[#allocation3 + $0x38] sm:$0xf]
    %v99 = vld [vmem:[#allocation3 + $0x3c] sm:$0xf]
    %v100 = vld [vmem:[#allocation6] sm:$0xf]
    %v101 = vld [vmem:[#allocation6 + $0x4] sm:$0xf]
    %v102 = vld [vmem:[#allocation6 + $0x8] sm:$0xf]
    %v103 = vld [vmem:[#allocation6 + $0xc] sm:$0xf]
    %v104 = vld [vmem:[#allocation6 + $0x10] sm:$0xf]
    %v105 = vld [vmem:[#allocation6 + $0x14] sm:$0xf]
    %v106 = vld [vmem:[#allocation6 + $0x18] sm:$0xf]
    %v107 = vld [vmem:[#allocation6 + $0x1c] sm:$0xf]
    %v108 = vld [vmem:[#allocation6 + $0x20] sm:$0xf]
    %v109 = vld [vmem:[#allocation6 + $0x24] sm:$0xf]
    %v110 = vld [vmem:[#allocation6 + $0x28] sm:$0xf]
    %v111 = vld [vmem:[#allocation6 + $0x2c] sm:$0xf]
    %v112 = vld [vmem:[#allocation6 + $0x30] sm:$0xf]
    %v113 = vld [vmem:[#allocation6 + $0x34] sm:$0xf]
    %v114 = vld [vmem:[#allocation6 + $0x38] sm:$0xf]
    %v115 = vld [vmem:[#allocation6 + $0x3c] sm:$0xf]
    %v132 = vunpack.c.l.b16 %v84
    %v133 = vunpack.c.l.b16 %v85
    %v134 = vunpack.c.l.b16 %v86
    %v135 = vunpack.c.l.b16 %v87
    %v136 = vunpack.c.l.b16 %v88
    %v137 = vunpack.c.l.b16 %v89
    %v138 = vunpack.c.l.b16 %v90
    %v139 = vunpack.c.l.b16 %v91
    %v140 = vunpack.c.l.b16 %v92
    %v141 = vunpack.c.l.b16 %v93
    %v142 = vunpack.c.l.b16 %v94
    %v143 = vunpack.c.l.b16 %v95
    %v144 = vunpack.c.l.b16 %v96
    %v145 = vunpack.c.l.b16 %v97
    %v146 = vunpack.c.l.b16 %v98
    %v147 = vunpack.c.l.b16 %v99
    %v148 = vpack.c.b16 %v133, %v132
    %v149 = vpack.c.b16 %v135, %v134
    %v150 = vpack.c.b16 %v137, %v136
    %v151 = vpack.c.b16 %v139, %v138
    %v152 = vpack.c.b16 %v141, %v140
    %v153 = vpack.c.b16 %v143, %v142
    %v154 = vpack.c.b16 %v145, %v144
    %v155 = vpack.c.b16 %v147, %v146
    %v180 = vunpack.c.l.b16 %v100
    %v181 = vunpack.c.l.b16 %v101
    %v182 = vunpack.c.l.b16 %v102
    %v183 = vunpack.c.l.b16 %v103
    %v184 = vunpack.c.l.b16 %v104
    %v185 = vunpack.c.l.b16 %v105
    %v186 = vunpack.c.l.b16 %v106
    %v187 = vunpack.c.l.b16 %v107
    %v188 = vunpack.c.l.b16 %v108
    %v189 = vunpack.c.l.b16 %v109
    %v190 = vunpack.c.l.b16 %v110
    %v191 = vunpack.c.l.b16 %v111
    %v192 = vunpack.c.l.b16 %v112
    %v193 = vunpack.c.l.b16 %v113
    %v194 = vunpack.c.l.b16 %v114
    %v195 = vunpack.c.l.b16 %v115
    %v196 = vpack.c.b16 %v181, %v180
    %v197 = vpack.c.b16 %v183, %v182
    %v198 = vpack.c.b16 %v185, %v184
    %v199 = vpack.c.b16 %v187, %v186
    %v200 = vpack.c.b16 %v189, %v188
    %v201 = vpack.c.b16 %v191, %v190
    %v202 = vpack.c.b16 %v193, %v192
    %v203 = vpack.c.b16 %v195, %v194
    %212 = vmatpush.bf16.msra.mxu0 %v203
    %213 = vmatpush.bf16.msra.mxu0 %v202
    %214 = vmatpush.bf16.msra.mxu0 %v201
    %215 = vmatpush.bf16.msra.mxu0 %v200
    %216 = vmatpush.bf16.msra.mxu0 %v199
    %217 = vmatpush.bf16.msra.mxu0 %v198
    %218 = vmatpush.bf16.msra.mxu0 %v197
    %219 = vmatpush.bf16.msra.mxu0 %v196
    %220 = vmatmul.bf16.gmra.mxu0 %v148
    %v221 = vpop.f32.mrf.mxu0
    %v222 = vadd.f32 0.0, %v221
    %v223 = vpop.f32.mrf.mxu0
    %v224 = vadd.f32 0.0, %v223
    %225 = vmatmul.bf16.gmra.mxu0 %v149
    %v226 = vpop.f32.mrf.mxu0
    %v227 = vadd.f32 0.0, %v226
    %v228 = vpop.f32.mrf.mxu0
    %v229 = vadd.f32 0.0, %v228
    %230 = vmatmul.bf16.gmra.mxu0 %v150
    %v231 = vpop.f32.mrf.mxu0
    %v232 = vadd.f32 0.0, %v231
    %v233 = vpop.f32.mrf.mxu0
    %v234 = vadd.f32 0.0, %v233
    %235 = vmatmul.bf16.gmra.mxu0 %v151
    %v236 = vpop.f32.mrf.mxu0
    %v237 = vadd.f32 0.0, %v236
    %v238 = vpop.f32.mrf.mxu0
    %v239 = vadd.f32 0.0, %v238
    %240 = vmatmul.bf16.gmra.mxu0 %v152
    %v241 = vpop.f32.mrf.mxu0
    %v242 = vadd.f32 0.0, %v241
    %v243 = vpop.f32.mrf.mxu0
    %v244 = vadd.f32 0.0, %v243
    %245 = vmatmul.bf16.gmra.mxu0 %v153
    %v246 = vpop.f32.mrf.mxu0
    %v247 = vadd.f32 0.0, %v246
    %v248 = vpop.f32.mrf.mxu0
    %v249 = vadd.f32 0.0, %v248
    %250 = vmatmul.bf16.gmra.mxu0 %v154
    %v251 = vpop.f32.mrf.mxu0
    %v252 = vadd.f32 0.0, %v251
    %v253 = vpop.f32.mrf.mxu0
    %v254 = vadd.f32 0.0, %v253
    %255 = vmatmul.bf16.gmra.mxu0 %v155
    %v256 = vpop.f32.mrf.mxu0
    %v257 = vadd.f32 0.0, %v256
    %v258 = vpop.f32.mrf.mxu0
    %v259 = vadd.f32 0.0, %v258
    %260 = vdwg.mxu0
    %v261 = vadd.f32 %v68, %v222
    %v262 = vadd.f32 %v69, %v224
    %v263 = vadd.f32 %v70, %v227
    %v264 = vadd.f32 %v71, %v229
    %v265 = vadd.f32 %v72, %v232
    %v266 = vadd.f32 %v73, %v234
    %v267 = vadd.f32 %v74, %v237
    %v268 = vadd.f32 %v75, %v239
    %v269 = vadd.f32 %v76, %v242
    %v270 = vadd.f32 %v77, %v244
    %v271 = vadd.f32 %v78, %v247
    %v272 = vadd.f32 %v79, %v249
    %v273 = vadd.f32 %v80, %v252
    %v274 = vadd.f32 %v81, %v254
    %v275 = vadd.f32 %v82, %v257
    %v276 = vadd.f32 %v83, %v259
    %277 = vst [vmem:[#allocation2] sm:$0xff] %v261
    %278 = vst [vmem:[#allocation2 + $0x8] sm:$0xff] %v262
    %279 = vst [vmem:[#allocation2 + $0x10] sm:$0xff] %v263
    %280 = vst [vmem:[#allocation2 + $0x18] sm:$0xff] %v264
    %281 = vst [vmem:[#allocation2 + $0x20] sm:$0xff] %v265
    %282 = vst [vmem:[#allocation2 + $0x28] sm:$0xff] %v266
    %283 = vst [vmem:[#allocation2 + $0x30] sm:$0xff] %v267
    %284 = vst [vmem:[#allocation2 + $0x38] sm:$0xff] %v268
    %285 = vst [vmem:[#allocation2 + $0x40] sm:$0xff] %v269
    %286 = vst [vmem:[#allocation2 + $0x48] sm:$0xff] %v270
    %287 = vst [vmem:[#allocation2 + $0x50] sm:$0xff] %v271
    %288 = vst [vmem:[#allocation2 + $0x58] sm:$0xff] %v272
    %289 = vst [vmem:[#allocation2 + $0x60] sm:$0xff] %v273
    %290 = vst [vmem:[#allocation2 + $0x68] sm:$0xff] %v274
    %291 = vst [vmem:[#allocation2 + $0x70] sm:$0xff] %v275
    %292 = vst [vmem:[#allocation2 + $0x78] sm:$0xff] %v276
    // Predicated region
    $region22: #{tpu_custom_call.1} parent=1 // pred_check
      %p293 = pneg %p48
    $region23: #{tpu_custom_call.1} parent=1 // pred_check_branch
      %295 = sbr.rel (%p293) target = $region25
    $region24: #{tpu_custom_call.1} parent=1 // pred_region
      %v296 = vld [vmem:[#allocation2] sm:$0xff]
      %v297 = vld [vmem:[#allocation2 + $0x8] sm:$0xff]
      %v298 = vld [vmem:[#allocation2 + $0x10] sm:$0xff]
      %v299 = vld [vmem:[#allocation2 + $0x18] sm:$0xff]
      %v300 = vld [vmem:[#allocation2 + $0x20] sm:$0xff]
      %v301 = vld [vmem:[#allocation2 + $0x28] sm:$0xff]
      %v302 = vld [vmem:[#allocation2 + $0x30] sm:$0xff]
      %v303 = vld [vmem:[#allocation2 + $0x38] sm:$0xff]
      %v304 = vld [vmem:[#allocation2 + $0x40] sm:$0xff]
      %v305 = vld [vmem:[#allocation2 + $0x48] sm:$0xff]
      %v306 = vld [vmem:[#allocation2 + $0x50] sm:$0xff]
      %v307 = vld [vmem:[#allocation2 + $0x58] sm:$0xff]
      %v308 = vld [vmem:[#allocation2 + $0x60] sm:$0xff]
      %v309 = vld [vmem:[#allocation2 + $0x68] sm:$0xff]
      %v310 = vld [vmem:[#allocation2 + $0x70] sm:$0xff]
      %v311 = vld [vmem:[#allocation2 + $0x78] sm:$0xff]
      %312 = vst [vmem:[#allocation8] sm:$0xff] %v296
      %313 = vst [vmem:[#allocation8 + $0x8] sm:$0xff] %v297
      %314 = vst [vmem:[#allocation8 + $0x10] sm:$0xff] %v298
      %315 = vst [vmem:[#allocation8 + $0x18] sm:$0xff] %v299
      %316 = vst [vmem:[#allocation8 + $0x20] sm:$0xff] %v300
      %317 = vst [vmem:[#allocation8 + $0x28] sm:$0xff] %v301
      %318 = vst [vmem:[#allocation8 + $0x30] sm:$0xff] %v302
      %319 = vst [vmem:[#allocation8 + $0x38] sm:$0xff] %v303
      %320 = vst [vmem:[#allocation8 + $0x40] sm:$0xff] %v304
      %321 = vst [vmem:[#allocation8 + $0x48] sm:$0xff] %v305
      %322 = vst [vmem:[#allocation8 + $0x50] sm:$0xff] %v306
      %323 = vst [vmem:[#allocation8 + $0x58] sm:$0xff] %v307
      %324 = vst [vmem:[#allocation8 + $0x60] sm:$0xff] %v308
      %325 = vst [vmem:[#allocation8 + $0x68] sm:$0xff] %v309
      %326 = vst [vmem:[#allocation8 + $0x70] sm:$0xff] %v310
      %327 = vst [vmem:[#allocation8 + $0x78] sm:$0xff] %v311
      %v328 = vadd.f32 %v296, %v297
      %v329 = vadd.f32 %v328, %v298
      %v330 = vadd.f32 %v329, %v299
      %v331 = vadd.f32 %v330, %v300
      %v332 = vadd.f32 %v331, %v301
      %v333 = vadd.f32 %v332, %v302
      %v334 = vadd.f32 %v333, %v303
      %v335 = vadd.f32 %v334, %v304
      %v336 = vadd.f32 %v335, %v305
      %v337 = vadd.f32 %v336, %v306
      %v338 = vadd.f32 %v337, %v307
      %v339 = vadd.f32 %v338, %v308
      %v340 = vadd.f32 %v339, %v309
      %v341 = vadd.f32 %v340, %v310
      %v342 = vadd.f32 %v341, %v311
      %v343 = vrot.slane %v342, 4
      %v344 = vadd.f32 %v342, %v343
      %v345 = vrot.slane %v344, 2
      %v346 = vadd.f32 %v344, %v345
      %v347 = vrot.slane %v346, 1
      %v348 = vadd.f32 %v346, %v347
      %349 = vst [vmem:[#allocation9] sm:$0x1] %v348
      %v350 = vmul.f32 %v296, %v296
      %v351 = vmul.f32 %v297, %v297
      %v352 = vmul.f32 %v298, %v298
      %v353 = vmul.f32 %v299, %v299
      %v354 = vmul.f32 %v300, %v300
      %v355 = vmul.f32 %v301, %v301
      %v356 = vmul.f32 %v302, %v302
      %v357 = vmul.f32 %v303, %v303
      %v358 = vmul.f32 %v304, %v304
      %v359 = vmul.f32 %v305, %v305
      %v360 = vmul.f32 %v306, %v306
      %v361 = vmul.f32 %v307, %v307
      %v362 = vmul.f32 %v308, %v308
      %v363 = vmul.f32 %v309, %v309
      %v364 = vmul.f32 %v310, %v310
      %v365 = vmul.f32 %v311, %v311
      %v366 = vadd.f32 %v350, %v351
      %v367 = vadd.f32 %v366, %v352
      %v368 = vadd.f32 %v367, %v353
      %v369 = vadd.f32 %v368, %v354
      %v370 = vadd.f32 %v369, %v355
      %v371 = vadd.f32 %v370, %v356
      %v372 = vadd.f32 %v371, %v357
      %v373 = vadd.f32 %v372, %v358
      %v374 = vadd.f32 %v373, %v359
      %v375 = vadd.f32 %v374, %v360
      %v376 = vadd.f32 %v375, %v361
      %v377 = vadd.f32 %v376, %v362
      %v378 = vadd.f32 %v377, %v363
      %v379 = vadd.f32 %v378, %v364
      %v380 = vadd.f32 %v379, %v365
      %v381 = vrot.slane %v380, 4
      %v382 = vadd.f32 %v380, %v381
      %v383 = vrot.slane %v382, 2
      %v384 = vadd.f32 %v382, %v383
      %v385 = vrot.slane %v384, 1
      %v386 = vadd.f32 %v384, %v385
      %387 = vst [vmem:[#allocation11] sm:$0x1] %v386
    $region25: #{tpu_custom_call.1} parent=1 // pred_fallthru
      _
    // Predicated region
    $region26: #{tpu_custom_call.1} parent=1 // pred_check
      _
    $region27: #{tpu_custom_call.1} parent=1 // pred_check_branch
      %389 = sbr.rel (0) target = $region29
    $region28: #{tpu_custom_call.1} parent=1 // pred_region
      %391 = vsyncadd [#allocation5], 0
      %s392 = sshll.u32 [#allocation8], 4
      %s393 = int_to_ptr.vmem [resolvable:$true] %s392
      %s394 = sshll.u32 %s2, 4
      %s395 = int_to_ptr.hbm [resolvable:$true] %s394
      %400 = dma.vmem_to_hbm [thread:$0]  %s393, 2048, %s395, [#allocation5], 128, 128, 8
    $region29: #{tpu_custom_call.1} parent=1 // pred_fallthru
      _
    // Predicated region
    $region30: #{tpu_custom_call.1} parent=1 // pred_check
      _
    $region31: #{tpu_custom_call.1} parent=1 // pred_check_branch
      %402 = sbr.rel (0) target = $region33
    $region32: #{tpu_custom_call.1} parent=1 // pred_region
      %404 = vsyncadd [#allocation10], 0
      %s406 = sshll.u32 [#allocation9], 4
      %s407 = int_to_ptr.vmem [resolvable:$true] %s406
      %s408 = sshll.u32 %s3, 4
      %s409 = int_to_ptr.hbm [resolvable:$true] %s408
      %411 = dma.vmem_to_hbm [thread:$0]  %s407, 16, %s409, [#allocation10]
    $region33: #{tpu_custom_call.1} parent=1 // pred_fallthru
      _
    // Predicated region
    $region34: #{tpu_custom_call.1} parent=1 // pred_check
      _
    $region35: #{tpu_custom_call.1} parent=1 // pred_check_branch
      %413 = sbr.rel (0) target = $region37
    $region36: #{tpu_custom_call.1} parent=1 // pred_region
      %415 = vsyncadd [#allocation10], 0
      %s417 = sshll.u32 [#allocation11], 4
      %s418 = int_to_ptr.vmem [resolvable:$true] %s417
      %s419 = sshll.u32 %s4, 4
      %s420 = int_to_ptr.hbm [resolvable:$true] %s419
      %422 = dma.vmem_to_hbm [thread:$0]  %s418, 16, %s420, [#allocation10]
    $region37: #{tpu_custom_call.1} parent=1 // pred_fallthru
      _
    // Predicated region
    $region38: #{tpu_custom_call.1} parent=1 // pred_check
      _
    $region39: #{tpu_custom_call.1} parent=1 // pred_check_branch
      %424 = sbr.rel (0) target = $region41
    $region40: #{tpu_custom_call.1} parent=1 // pred_region
      %426 = dma.done [#allocation5], 2048
    $region41: #{tpu_custom_call.1} parent=1 // pred_fallthru
      _
    // Predicated region
    $region42: #{tpu_custom_call.1} parent=1 // pred_check
      _
    $region43: #{tpu_custom_call.1} parent=1 // pred_check_branch
      %428 = sbr.rel (0) target = $region45
    $region44: #{tpu_custom_call.1} parent=1 // pred_region
      %430 = dma.done [#allocation10], 16
    $region45: #{tpu_custom_call.1} parent=1 // pred_fallthru
      _
    // Predicated region
    $region46: #{tpu_custom_call.1} parent=1 // pred_check
      _
    $region47: #{tpu_custom_call.1} parent=1 // pred_check_branch
      %432 = sbr.rel (0) target = $region49
    $region48: #{tpu_custom_call.1} parent=1 // pred_region
      %434 = dma.done [#allocation10], 16
    $region49: #{tpu_custom_call.1} parent=1 // pred_fallthru
      _
    %435 = vsyncpa [#allocation4], 1
    %436 = vsyncpa [#allocation7], 1
    %437 = vsyncpa [#allocation5], 1
    %438 = vsyncpa [#allocation10], 1

</llo_original>
